<compile_context>
chip_gen: v6e
topology: v6e:2x2x1
jax: 0.10.0
libtpu: 0.0.40
codegen_flags: <defaults>
</compile_context>

<pallas_src>
import numpy as np
import jax
import jax.numpy as jnp
from jax.experimental import pallas as pl
from jax.experimental.pallas import tpu as pltpu


_ROW_BLOCK = 512           # 512 rows x 128 lanes x 4 B = 256 KiB per tile per array
_SMALL_ELEMS = 512 * 128   # below this many total elements, one block is cheaper


def _posenc_add_kernel(x_ref, pe_ref, o_ref):
    # Works for both paths:
    #   tiled:        x_ref (1, rb, 128) + pe_ref (1, rb, 128)
    #   single-block: x_ref (B, R, L)    + pe_ref (1, R, L)   (broadcast over B)
    o_ref[...] = x_ref[...] + pe_ref[...]


def make_pe_table(d_model: int, max_len: int) -> jnp.ndarray:
    """Deterministic sinusoidal table, identical to the PyTorch __init__."""
    position = np.arange(0, max_len, dtype=np.float32)[:, None]           # (L, 1)
    div_term = np.exp(
        np.arange(0, d_model, 2, dtype=np.float32) * (-np.log(10000.0) / d_model)
    )                                                                      # (D/2,)
    pe = np.zeros((max_len, d_model), dtype=np.float32)
    pe[:, 0::2] = np.sin(position * div_term)
    pe[:, 1::2] = np.cos(position * div_term)
    return jnp.asarray(pe[None, :, :])                                     # (1, L, D)


def _single_block_call(x3: jnp.ndarray, pe3: jnp.ndarray) -> jnp.ndarray:
    """One grid step, full-extent blocks (always satisfies the (8,128) rule)."""
    B, R, L = x3.shape
    return pl.pallas_call(
        _posenc_add_kernel,
        out_shape=jax.ShapeDtypeStruct((B, R, L), x3.dtype),
        grid_spec=pltpu.PrefetchScalarGridSpec(
            num_scalar_prefetch=0,
            grid=(1,),
            in_specs=[
                pl.BlockSpec((B, R, L), lambda i: (0, 0, 0)),
                pl.BlockSpec((1, R, L), lambda i: (0, 0, 0)),
            ],
            out_specs=pl.BlockSpec((B, R, L), lambda i: (0, 0, 0)),
        ),
        compiler_params=pltpu.CompilerParams(
            dimension_semantics=("arbitrary",)),
    )(x3, pe3)


def _tiled_call(x3: jnp.ndarray, pe3: jnp.ndarray, row_block: int) -> jnp.ndarray:
    """Lane-dense pipelined path: x3 (B, R, 128), pe3 (1, R, 128)."""
    B, R, L = x3.shape
    nr = pl.cdiv(R, row_block)
    # VMEM budget: 3 arrays x 2 buffers x (row_block*128*4 B) = 1.5 MiB for
    # row_block=512 -> fits v5e's 16 MiB default scoped limit and v7x's 64 MiB
    # physical VMEM with large headroom; no vmem_limit override needed.
    return pl.pallas_call(
        _posenc_add_kernel,
        out_shape=jax.ShapeDtypeStruct((B, R, L), x3.dtype),
        grid_spec=pltpu.PrefetchScalarGridSpec(
            num_scalar_prefetch=0,
            # rows outer, batch inner -> pe block index is constant across the
            # inner batch steps, so the pe tile stays resident in VMEM.
            grid=(nr, B),
            in_specs=[
                pl.BlockSpec((1, row_block, L), lambda r, b: (b, r, 0)),
                pl.BlockSpec((1, row_block, L), lambda r, b: (0, r, 0)),
            ],
            out_specs=pl.BlockSpec((1, row_block, L), lambda r, b: (b, r, 0)),
        ),
        compiler_params=pltpu.CompilerParams(
            dimension_semantics=("parallel", "parallel")),
        input_output_aliases={0: 0},   # out buffer reuses x buffer (x += pe)
    )(x3, pe3)


def positional_encoding(x: jnp.ndarray, pe: jnp.ndarray) -> jnp.ndarray:
    """x: (B, S, D); pe: (1, max_len, D). Returns x + pe[:, :S, :] (eval-mode dropout)."""
    B, S, D = x.shape
    N = S * D
    pe_slice = pe[:, :S, :]                        # static slice, glue outside kernel

    if N % 128 != 0:
        # Irregular feature size: fall back to a single full-extent block.
        # TODO(synk): very large irregular (S*D not multiple of 128) inputs would
        # need explicit padding to stay within VMEM; not needed for this module.
        return _single_block_call(x, pe_slice)

    # Lane-dense view: last dim is exactly the 128-lane vreg width, so all
    # loads/stores are full-width and unmasked regardless of D.
    R = N // 128
    x3 = x.reshape(B, R, 128)
    pe3 = pe_slice.reshape(1, R, 128)

    if B * N <= _SMALL_ELEMS:
        out = _single_block_call(x3, pe3)          # tiny input: no per-step overhead
    else:
        out = _tiled_call(x3, pe3, min(R, _ROW_BLOCK))
    return out.reshape(B, S, D)


if __name__ == "__main__":
    key = jax.random.PRNGKey(0)

    # Test 1: small shapes consistent with the module (single-block path).
    B, S, D = 2, 8, 32
    x = jax.random.normal(key, (B, S, D), dtype=jnp.float32)
    pe = make_pe_table(D, max_len=64)
    ref = x + pe[:, :S, :]                         # reference computed before the call
    out = jax.block_until_ready(positional_encoding(x, pe))
    np.testing.assert_allclose(np.asarray(out), np.asarray(ref), rtol=1e-6, atol=1e-6)

    # Test 2: modestly larger shape to exercise the lane-dense tiled path
    # (B=2, S=512, D=256 -> R=1024 rows of 128 lanes, grid=(2, 2)).
    B2, S2, D2 = 2, 512, 256
    _, k2 = jax.random.split(key)
    xl = jax.random.normal(k2, (B2, S2, D2), dtype=jnp.float32)
    pel = make_pe_table(D2, max_len=1024)
    refl = xl + pel[:, :S2, :]
    outl = jax.block_until_ready(positional_encoding(xl, pel))
    np.testing.assert_allclose(np.asarray(outl), np.asarray(refl), rtol=1e-6, atol=1e-6)

    print("KERNEL_OK")
</pallas_src>

<mosaic_0001>
module attributes {stable_mosaic.version = 11 : i64} {
  func.func @_posenc_add_kernel(%arg0: i32, %arg1: memref<2x2x128xf32, #tpu.memory_space<vmem>>, %arg2: memref<1x2x128xf32, #tpu.memory_space<vmem>>, %arg3: memref<2x2x128xf32, #tpu.memory_space<vmem>>) attributes {dimension_semantics = [#tpu.dimension_semantics<arbitrary>], iteration_bounds = array<i64: 1>, scalar_prefetch = 0 : i64, scratch_operands = 0 : i64, tpu.core_type = #tpu.core_type<tc>, window_params = [{pipeline_mode = #tpu.pipeline_mode<synchronous>, transform_indices = @transform_0, window_bounds = array<i64: 2, 2, 128>}, {pipeline_mode = #tpu.pipeline_mode<synchronous>, transform_indices = @transform_1, window_bounds = array<i64: 1, 2, 128>}, {pipeline_mode = #tpu.pipeline_mode<synchronous>, transform_indices = @transform_2, window_bounds = array<i64: 2, 2, 128>}]} {
    %c0 = arith.constant 0 : index
    %c0_0 = arith.constant 0 : index
    %c0_1 = arith.constant 0 : index
    %0 = vector.load %arg1[%c0, %c0_0, %c0_1] : memref<2x2x128xf32, #tpu.memory_space<vmem>>, vector<2x2x128xf32>
    %c0_2 = arith.constant 0 : index
    %c0_3 = arith.constant 0 : index
    %c0_4 = arith.constant 0 : index
    %1 = vector.load %arg2[%c0_2, %c0_3, %c0_4] : memref<1x2x128xf32, #tpu.memory_space<vmem>>, vector<1x2x128xf32>
    %2 = vector.broadcast %1 : vector<1x2x128xf32> to vector<2x2x128xf32>
    %3 = arith.addf %0, %2 : vector<2x2x128xf32>
    %c0_5 = arith.constant 0 : index
    %c0_6 = arith.constant 0 : index
    %c0_7 = arith.constant 0 : index
    %4 = vector.load %arg3[%c0_5, %c0_6, %c0_7] : memref<2x2x128xf32, #tpu.memory_space<vmem>>, vector<2x2x128xf32>
    tpu.vector_store %arg3[%c0_5, %c0_6, %c0_7], %3 {strides = array<i32>} : memref<2x2x128xf32, #tpu.memory_space<vmem>>, vector<2x2x128xf32>,
    return
  }
  func.func @transform_0(%arg0: i32) -> (i32, i32, i32) {
    %c0_i32 = arith.constant 0 : i32
    %c0_i32_0 = arith.constant 0 : i32
    %c0_i32_1 = arith.constant 0 : i32
    %c0_i32_2 = arith.constant 0 : i32
    return %c0_i32, %c0_i32_0, %c0_i32_1 : i32, i32, i32
  }
  func.func @transform_1(%arg0: i32) -> (i32, i32, i32) {
    %c0_i32 = arith.constant 0 : i32
    %c0_i32_0 = arith.constant 0 : i32
    %c0_i32_1 = arith.constant 0 : i32
    %c0_i32_2 = arith.constant 0 : i32
    return %c0_i32, %c0_i32_0, %c0_i32_1 : i32, i32, i32
  }
  func.func @transform_2(%arg0: i32) -> (i32, i32, i32) {
    %c0_i32 = arith.constant 0 : i32
    %c0_i32_0 = arith.constant 0 : i32
    %c0_i32_1 = arith.constant 0 : i32
    %c0_i32_2 = arith.constant 0 : i32
    return %c0_i32, %c0_i32_0, %c0_i32_1 : i32, i32, i32
  }
}

</mosaic_0001>

<llo_original>
// kernel: tpu_custom_call.1
$region0: #{tpu_custom_call.1}
  #allocation0 [shape = 'u32[]', space=smem, size = 0x4, offset = 0x4, fixed_abs, tag = 'smem constant byte address 0x4 - core index']
  #allocation1 [shape = 'u32[144,128]{1,0:T(1,128)}', space=vmem, size = 0x12000, scoped, tag = 'internal scratch']
  %s0 = inlined_call_operand.hbm [shape: f32[2,2,128], index: 0, kind: input, shape index: {}]
  %s1 = inlined_call_operand.hbm [shape: f32[1,2,128], index: 1, kind: input, shape index: {}]
  %s2 = inlined_call_operand.hbm [shape: f32[2,2,128], index: 2, kind: output, shape index: {}]
  %s3 = sld [smem:[#allocation0]]
  $region26: #{tpu_custom_call.1} parent=0
    _
  %s5 = ssub.s32 1, %s3
  %s6 = scalar_select 0, %s5, %s3
  $region1: #{tpu_custom_call.1} parent=0
    #allocation2 [shape = 'u8[2048]{0}', space=vmem, size = 0x800, scoped, tag = 'input window, operand 0, single buffered']
    #allocation3 [shape = 's32[1]{0}', space=sflag, size = 0x4, scoped, tag = 'scoped memory for tpu_custom_call.1']
    #allocation4 [shape = 's32[1]{0}', space=sflag, size = 0x4, scoped, tag = 'scoped memory for tpu_custom_call.1']
    #allocation5 [shape = 'u8[1024]{0}', space=vmem, size = 0x400, scoped, tag = 'input window, operand 1, single buffered']
    #allocation6 [shape = 's32[1]{0}', space=sflag, size = 0x4, scoped, tag = 'scoped memory for tpu_custom_call.1']
    #allocation7 [shape = 'u8[2048]{0}', space=vmem, size = 0x800, scoped, tag = 'output window, operand 0, single buffered']
    %7 = vsyncpa [#allocation3], 0
    %8 = vsyncpa [#allocation6], 0
    %9 = vsyncpa [#allocation4], 0
    // Predicated region
    $region2: #{tpu_custom_call.1} parent=1 // pred_check
      _
    $region3: #{tpu_custom_call.1} parent=1 // pred_check_branch
      %11 = sbr.rel (0) target = $region5
    $region4: #{tpu_custom_call.1} parent=1 // pred_region
      %s13 = ssub.s32 64, 64
      %14 = vsyncadd [#allocation3], %s13
      %s15 = sshll.u32 [#allocation2], 4
      %s16 = int_to_ptr.vmem [resolvable:$true] %s15
      %21 = dma.hbm_to_vmem [thread:$0]  %s0, 64, %s16, [#allocation3], 32, 32, 2
    $region5: #{tpu_custom_call.1} parent=1 // pred_fallthru
      _
    // Predicated region
    $region6: #{tpu_custom_call.1} parent=1 // pred_check
      _
    $region7: #{tpu_custom_call.1} parent=1 // pred_check_branch
      %23 = sbr.rel (0) target = $region9
    $region8: #{tpu_custom_call.1} parent=1 // pred_region
      %s25 = ssub.s32 32, 32
      %26 = vsyncadd [#allocation6], %s25
      %s28 = sshll.u32 [#allocation5], 4
      %s29 = int_to_ptr.vmem [resolvable:$true] %s28
      %31 = dma.hbm_to_vmem [thread:$0]  %s1, 32, %s29, [#allocation6]
    $region9: #{tpu_custom_call.1} parent=1 // pred_fallthru
      _
    // Predicated region
    $region10: #{tpu_custom_call.1} parent=1 // pred_check
      _
    $region11: #{tpu_custom_call.1} parent=1 // pred_check_branch
      %33 = sbr.rel (0) target = $region13
    $region12: #{tpu_custom_call.1} parent=1 // pred_region
      %34 = dma.done [#allocation3], 64
    $region13: #{tpu_custom_call.1} parent=1 // pred_fallthru
      _
    // Predicated region
    $region14: #{tpu_custom_call.1} parent=1 // pred_check
      _
    $region15: #{tpu_custom_call.1} parent=1 // pred_check_branch
      %36 = sbr.rel (0) target = $region17
    $region16: #{tpu_custom_call.1} parent=1 // pred_region
      %37 = dma.done [#allocation6], 32
    $region17: #{tpu_custom_call.1} parent=1 // pred_fallthru
      _
    %v38 = vld [vmem:[#allocation2] sm:$0x3]
    %v39 = vld [vmem:[#allocation2 + $0x2] sm:$0x3]
    %v40 = vld [vmem:[#allocation5] sm:$0x3]
    %v41 = vadd.f32 %v38, %v40
    %v42 = vadd.f32 %v39, %v40
    %43 = vst [vmem:[#allocation7] sm:$0x3] %v41
    %44 = vst [vmem:[#allocation7 + $0x2] sm:$0x3] %v42
    // Predicated region
    $region18: #{tpu_custom_call.1} parent=1 // pred_check
      _
    $region19: #{tpu_custom_call.1} parent=1 // pred_check_branch
      %46 = sbr.rel (0) target = $region21
    $region20: #{tpu_custom_call.1} parent=1 // pred_region
      %s48 = ssub.s32 64, 64
      %49 = vsyncadd [#allocation4], %s48
      %s50 = sshll.u32 [#allocation7], 4
      %s51 = int_to_ptr.vmem [resolvable:$true] %s50
      %56 = dma.vmem_to_hbm [thread:$0]  %s51, 64, %s2, [#allocation4], 32, 32, 2
    $region21: #{tpu_custom_call.1} parent=1 // pred_fallthru
      _
    // Predicated region
    $region22: #{tpu_custom_call.1} parent=1 // pred_check
      _
    $region23: #{tpu_custom_call.1} parent=1 // pred_check_branch
      %58 = sbr.rel (0) target = $region25
    $region24: #{tpu_custom_call.1} parent=1 // pred_region
      %59 = dma.done [#allocation4], 64
    $region25: #{tpu_custom_call.1} parent=1 // pred_fallthru
      _
    %60 = vsyncpa [#allocation3], 1
    %61 = vsyncpa [#allocation6], 1
    %62 = vsyncpa [#allocation4], 1

</llo_original>
